<compile_context>
chip_gen: v6e
topology: v6e:2x2x1
jax: 0.10.0
libtpu: 0.0.40
codegen_flags: <defaults>
</compile_context>

<pallas_src>
import jax
import jax.numpy as jnp
from jax import lax
from jax.experimental import pallas as pl
from jax.experimental.pallas import tpu as pltpu


def _linear_system_kernel(x_ref, w_ref, out_ref):
    # Single fused matmul: out = x @ W.T with x = [state | action] (batch, K)
    # and W = [A | B] (n_state, K).  The transpose is expressed as contracting
    # both operands on their last (K) axis — handled directly by the MXU,
    # accumulation in f32.
    out_ref[...] = lax.dot_general(
        x_ref[...],
        w_ref[...],
        dimension_numbers=(((1,), (1,)), ((), ())),   # contract K with K  (x @ W.T)
        preferred_element_type=jnp.float32,
    ).astype(out_ref.dtype)


def linear_system_forward(state, action, A, B):
    """Pallas TPU implementation of LinearSystem.forward.

    state:  (batch, n_state)
    action: (batch, n_control)
    A:      (n_state, n_state)
    B:      (n_state, n_control)
    returns (batch, n_state)  ==  state @ A.T + action @ B.T
    """
    batch, n_state = state.shape
    _, n_control = action.shape
    assert A.shape == (n_state, n_state)
    assert B.shape == (n_state, n_control)

    # Operand glue (cheap concats, NO transposes — no extra HBM round trip for
    # transposed weight copies).
    x = jnp.concatenate([state, action], axis=1)   # (batch, K)
    W = jnp.concatenate([A, B], axis=1)            # (n_state, K)
    K = n_state + n_control

    itemsize = jnp.dtype(state.dtype).itemsize
    cost = pl.CostEstimate(
        flops=2 * batch * K * n_state,
        transcendentals=0,
        bytes_accessed=(batch * K + n_state * K + batch * n_state) * itemsize,
    )

    # Gridless single-tile call: whole arrays live in VMEM, blocks == full
    # array dims (satisfies the (8,128) rule trivially).
    return pl.pallas_call(
        _linear_system_kernel,
        out_shape=jax.ShapeDtypeStruct((batch, n_state), state.dtype),
        in_specs=[
            pl.BlockSpec(memory_space=pltpu.MemorySpace.VMEM),
            pl.BlockSpec(memory_space=pltpu.MemorySpace.VMEM),
        ],
        out_specs=pl.BlockSpec(memory_space=pltpu.MemorySpace.VMEM),
        cost_estimate=cost,
    )(x, W)


if __name__ == "__main__":
    # Small shapes consistent with the module: linear dynamical system
    # x_{t+1} = A x_t + B u_t applied over a batch of states/actions.
    batch = 8
    n_state = 32
    n_control = 16

    key = jax.random.PRNGKey(0)
    k_state, k_action, k_A, k_B = jax.random.split(key, 4)

    state = jax.random.normal(k_state, (batch, n_state), dtype=jnp.float32)
    action = jax.random.normal(k_action, (batch, n_control), dtype=jnp.float32)
    # Deterministic synthetic system matrices (module stores params['A'], params['B']).
    A = jax.random.normal(k_A, (n_state, n_state), dtype=jnp.float32) * 0.1
    B = jax.random.normal(k_B, (n_state, n_control), dtype=jnp.float32) * 0.1

    out = linear_system_forward(state, action, A, B)
    out = jax.block_until_ready(out)

    # Reference check (pure JAX) for correctness.
    ref = state @ A.T + action @ B.T
    assert out.shape == (batch, n_state)
    assert jnp.allclose(out, ref, atol=1e-5, rtol=1e-5)

    print("KERNEL_OK")
</pallas_src>

<mosaic_0001>
module attributes {stable_mosaic.version = 11 : i64} {
  func.func @_linear_system_kernel(%arg0: memref<8x48xf32, #tpu.memory_space<vmem>>, %arg1: memref<32x48xf32, #tpu.memory_space<vmem>>, %arg2: memref<8x32xf32, #tpu.memory_space<vmem>>) attributes {dimension_semantics = [], scalar_prefetch = 0 : i64, scratch_operands = 0 : i64, tpu.core_type = #tpu.core_type<tc>} {
    %c0 = arith.constant 0 : index
    %c0_0 = arith.constant 0 : index
    %0 = vector.load %arg0[%c0, %c0_0] : memref<8x48xf32, #tpu.memory_space<vmem>>, vector<8x48xf32>
    %c0_1 = arith.constant 0 : index
    %c0_2 = arith.constant 0 : index
    %1 = vector.load %arg1[%c0_1, %c0_2] : memref<32x48xf32, #tpu.memory_space<vmem>>, vector<32x48xf32>
    %cst = arith.constant dense<0.000000e+00> : vector<8x32xf32>
    %2 = tpu.matmul %0, %1, %cst {dimension_numbers = #tpu.dot_dimension_numbers<[1], [1], [0], [0], [0, 0, 1, 0], [], []>} : vector<8x48xf32>, vector<32x48xf32>, vector<8x32xf32> -> vector<8x32xf32>
    %c0_3 = arith.constant 0 : index
    %c0_4 = arith.constant 0 : index
    %3 = vector.load %arg2[%c0_3, %c0_4] : memref<8x32xf32, #tpu.memory_space<vmem>>, vector<8x32xf32>
    tpu.vector_store %arg2[%c0_3, %c0_4], %2 {strides = array<i32>} : memref<8x32xf32, #tpu.memory_space<vmem>>, vector<8x32xf32>,
    return
  }
}

</mosaic_0001>

<llo_original>
// kernel: tpu_custom_call.1
$region0: #{tpu_custom_call.1}
  #allocation0 [shape = 'u32[]', space=smem, size = 0x4, offset = 0x4, fixed_abs, tag = 'smem constant byte address 0x4 - core index']
  #allocation1 [shape = 'u32[144,128]{1,0:T(1,128)}', space=vmem, size = 0x12000, scoped, tag = 'internal scratch']
  %s0 = inlined_call_operand.hbm [shape: f32[8,48], index: 0, kind: input, shape index: {}]
  %s1 = inlined_call_operand.hbm [shape: f32[32,48], index: 1, kind: input, shape index: {}]
  %s2 = inlined_call_operand.hbm [shape: f32[8,32], index: 2, kind: output, shape index: {}]
  %s3 = sld [smem:[#allocation0]]
  $region26: #{tpu_custom_call.1} parent=0
    _
  %s5 = ssub.s32 1, %s3
  %s6 = scalar_select 0, %s5, %s3
  $region1: #{tpu_custom_call.1} parent=0
    #allocation2 [shape = 'u8[4096]{0}', space=vmem, size = 0x1000, scoped, tag = 'input window, operand 0, single buffered']
    #allocation3 [shape = 's32[1]{0}', space=sflag, size = 0x4, scoped, tag = 'scoped memory for tpu_custom_call.1']
    #allocation4 [shape = 's32[1]{0}', space=sflag, size = 0x4, scoped, tag = 'scoped memory for tpu_custom_call.1']
    #allocation5 [shape = 'u8[16384]{0}', space=vmem, size = 0x4000, scoped, tag = 'input window, operand 1, single buffered']
    #allocation6 [shape = 's32[1]{0}', space=sflag, size = 0x4, scoped, tag = 'scoped memory for tpu_custom_call.1']
    #allocation7 [shape = 'u8[4096]{0}', space=vmem, size = 0x1000, scoped, tag = 'output window, operand 0, single buffered']
    %7 = vsyncpa [#allocation3], 0
    %8 = vsyncpa [#allocation6], 0
    %9 = vsyncpa [#allocation4], 0
    // Predicated region
    $region2: #{tpu_custom_call.1} parent=1 // pred_check
      _
    $region3: #{tpu_custom_call.1} parent=1 // pred_check_branch
      %11 = sbr.rel (0) target = $region5
    $region4: #{tpu_custom_call.1} parent=1 // pred_region
      %s13 = ssub.s32 128, 128
      %14 = vsyncadd [#allocation3], %s13
      %s16 = sshll.u32 [#allocation2], 4
      %s17 = int_to_ptr.vmem [resolvable:$true] %s16
      %19 = dma.hbm_to_vmem [thread:$0]  %s0, 128, %s17, [#allocation3]
    $region5: #{tpu_custom_call.1} parent=1 // pred_fallthru
      _
    // Predicated region
    $region6: #{tpu_custom_call.1} parent=1 // pred_check
      _
    $region7: #{tpu_custom_call.1} parent=1 // pred_check_branch
      %21 = sbr.rel (0) target = $region9
    $region8: #{tpu_custom_call.1} parent=1 // pred_region
      %s23 = ssub.s32 512, 512
      %24 = vsyncadd [#allocation6], %s23
      %s25 = sshll.u32 [#allocation5], 4
      %s26 = int_to_ptr.vmem [resolvable:$true] %s25
      %31 = dma.hbm_to_vmem [thread:$0]  %s1, 512, %s26, [#allocation6], 128, 128, 8
    $region9: #{tpu_custom_call.1} parent=1 // pred_fallthru
      _
    // Predicated region
    $region10: #{tpu_custom_call.1} parent=1 // pred_check
      _
    $region11: #{tpu_custom_call.1} parent=1 // pred_check_branch
      %33 = sbr.rel (0) target = $region13
    $region12: #{tpu_custom_call.1} parent=1 // pred_region
      %34 = dma.done [#allocation3], 128
    $region13: #{tpu_custom_call.1} parent=1 // pred_fallthru
      _
    // Predicated region
    $region14: #{tpu_custom_call.1} parent=1 // pred_check
      _
    $region15: #{tpu_custom_call.1} parent=1 // pred_check_branch
      %36 = sbr.rel (0) target = $region17
    $region16: #{tpu_custom_call.1} parent=1 // pred_region
      %37 = dma.done [#allocation6], 512
    $region17: #{tpu_custom_call.1} parent=1 // pred_fallthru
      _
    %v38 = vld [vmem:[#allocation2] sm:$0xff]
    %v39 = vld [vmem:[#allocation5] sm:$0xff]
    %v40 = vld [vmem:[#allocation5 + $0x8] sm:$0xff]
    %v41 = vld [vmem:[#allocation5 + $0x10] sm:$0xff]
    %v42 = vld [vmem:[#allocation5 + $0x18] sm:$0xff]
    %vm43 = vcmask 392192
    %v45 = vsel %vm43, %v38, 0
    %v48 = vsel %vm43, %v39, 0
    %v51 = vsel %vm43, %v40, 0
    %v54 = vsel %vm43, %v41, 0
    %v57 = vsel %vm43, %v42, 0
    %59 = vmatprep.subr.mxu0 0.0
    %60 = vmatpush1.xpose.msra.mxu0 0.0
    %61 = vmatprep.subr.mxu0 0.0
    %62 = vmatpush1.xpose.msra.mxu0 0.0
    %63 = vmatprep.subr.mxu0 0.0
    %64 = vmatpush1.xpose.msra.mxu0 0.0
    %65 = vmatprep.subr.mxu0 0.0
    %66 = vmatpush1.xpose.msra.mxu0 0.0
    %67 = vmatprep.subr.mxu0 0.0
    %68 = vmatpush1.xpose.msra.mxu0 0.0
    %69 = vmatprep.subr.mxu0 0.0
    %70 = vmatpush1.xpose.msra.mxu0 0.0
    %71 = vmatprep.subr.mxu0 0.0
    %72 = vmatpush1.xpose.msra.mxu0 0.0
    %73 = vmatprep.subr.mxu0 0.0
    %74 = vmatpush1.xpose.msra.mxu0 0.0
    %75 = vmatprep.subr.mxu0 0.0
    %76 = vmatpush1.xpose.msra.mxu0 0.0
    %77 = vmatprep.subr.mxu0 0.0
    %78 = vmatpush1.xpose.msra.mxu0 0.0
    %79 = vmatprep.subr.mxu0 0.0
    %80 = vmatpush1.xpose.msra.mxu0 0.0
    %81 = vmatprep.subr.mxu0 0.0
    %82 = vmatpush1.xpose.msra.mxu0 0.0
    %83 = vmatprep.subr.mxu0 0.0
    %84 = vmatpush1.xpose.msra.mxu0 %v57
    %85 = vmatprep.subr.mxu0 0.0
    %86 = vmatpush1.xpose.msra.mxu0 %v54
    %87 = vmatprep.subr.mxu0 0.0
    %88 = vmatpush1.xpose.msra.mxu0 %v51
    %89 = vmatprep.subr.mxu0 0.0
    %90 = vmatpush1.xpose.msra.mxu0 %v48
    %91 = vmatprep.subr.mxu0 0.0
    %92 = vmatpush2.xpose.msra.mxu0 0.0
    %93 = vmatprep.subr.mxu0 0.0
    %94 = vmatpush2.xpose.msra.mxu0 0.0
    %95 = vmatprep.subr.mxu0 0.0
    %96 = vmatpush2.xpose.msra.mxu0 0.0
    %97 = vmatprep.subr.mxu0 0.0
    %98 = vmatpush2.xpose.msra.mxu0 0.0
    %99 = vmatprep.subr.mxu0 0.0
    %100 = vmatpush2.xpose.msra.mxu0 0.0
    %101 = vmatprep.subr.mxu0 0.0
    %102 = vmatpush2.xpose.msra.mxu0 0.0
    %103 = vmatprep.subr.mxu0 0.0
    %104 = vmatpush2.xpose.msra.mxu0 0.0
    %105 = vmatprep.subr.mxu0 0.0
    %106 = vmatpush2.xpose.msra.mxu0 0.0
    %107 = vmatprep.subr.mxu0 0.0
    %108 = vmatpush2.xpose.msra.mxu0 0.0
    %109 = vmatprep.subr.mxu0 0.0
    %110 = vmatpush2.xpose.msra.mxu0 0.0
    %111 = vmatprep.subr.mxu0 0.0
    %112 = vmatpush2.xpose.msra.mxu0 0.0
    %113 = vmatprep.subr.mxu0 0.0
    %114 = vmatpush2.xpose.msra.mxu0 0.0
    %115 = vmatprep.subr.mxu0 0.0
    %116 = vmatpush2.xpose.msra.mxu0 0.0
    %117 = vmatprep.subr.mxu0 0.0
    %118 = vmatpush2.xpose.msra.mxu0 0.0
    %119 = vmatprep.subr.mxu0 0.0
    %120 = vmatpush2.xpose.msra.mxu0 0.0
    %121 = vmatprep.subr.mxu0 0.0
    %122 = vmatpush2.xpose.msra.mxu0 0.0
    %123 = vmatprep.mubr.f32.mxu0 0.0
    %124 = vmatmul.mubr.f32.gmra.mxu0 %v45
    %v125 = vpop.f32.mrf.mxu0
    %v126 = vadd.f32 0.0, %v125
    %v127 = vpop.f32.mrf.mxu0
    %128 = vdwg.mxu0
    %vm129 = vcmask 261120
    %130 = vst.msk [vmem:[#allocation7] sm:$0xff] %vm129, %v126
    // Predicated region
    $region18: #{tpu_custom_call.1} parent=1 // pred_check
      _
    $region19: #{tpu_custom_call.1} parent=1 // pred_check_branch
      %132 = sbr.rel (0) target = $region21
    $region20: #{tpu_custom_call.1} parent=1 // pred_region
      %s134 = ssub.s32 128, 128
      %135 = vsyncadd [#allocation4], %s134
      %s137 = sshll.u32 [#allocation7], 4
      %s138 = int_to_ptr.vmem [resolvable:$true] %s137
      %140 = dma.vmem_to_hbm [thread:$0]  %s138, 128, %s2, [#allocation4]
    $region21: #{tpu_custom_call.1} parent=1 // pred_fallthru
      _
    // Predicated region
    $region22: #{tpu_custom_call.1} parent=1 // pred_check
      _
    $region23: #{tpu_custom_call.1} parent=1 // pred_check_branch
      %142 = sbr.rel (0) target = $region25
    $region24: #{tpu_custom_call.1} parent=1 // pred_region
      %143 = dma.done [#allocation4], 128
    $region25: #{tpu_custom_call.1} parent=1 // pred_fallthru
      _
    %144 = vsyncpa [#allocation3], 1
    %145 = vsyncpa [#allocation6], 1
    %146 = vsyncpa [#allocation4], 1

</llo_original>
